<compile_context>
chip_gen: v5e
topology: v5e:2x2
jax: 0.10.0
libtpu: 0.0.40
codegen_flags: <defaults>
</compile_context>

<pallas_src>
import math
from functools import partial

import jax
import jax.numpy as jnp
from jax.experimental import pallas as pl
from jax.experimental.pallas import tpu as pltpu


def _mha_kernel(x_ref, wqkv_ref, bqkv_ref, wo_ref, bo_ref, out_ref, *opt_refs,
                num_heads, need_weights):
    """One (batch-block, head) grid step of fused self-attention.

    x_ref    : (TB, S, D)      input tokens for this batch block (f32 or bf16)
    wqkv_ref : (1, D, 3*Dh)    fused per-head Q|K|V weights (pre-transposed, Q pre-scaled)
    bqkv_ref : (1, 1, 3*Dh)    fused per-head Q|K|V bias (Q pre-scaled), f32
    wo_ref   : (1, Dh, D)      per-head slice of the output projection (pre-transposed)
    bo_ref   : (1, D)          output projection bias, f32
    out_ref  : (TB, S, D) f32  attention output  (block held across the head axis)
    wts_ref  : (TB, S, S) f32  head-averaged attention probabilities (optional)
    """
    wts_ref = opt_refs[0] if need_weights else None
    h = pl.program_id(1)
    TB, S, D = x_ref.shape
    Dh = wo_ref.shape[1]
    mxu_dtype = x_ref.dtype                              # f32 or bf16 MXU operands

    # Fused QKV projection on the flattened (TB*S, D) slab (one MXU dot).
    x2 = x_ref[...].reshape(TB * S, D)
    qkv = jnp.dot(x2, wqkv_ref[0],
                  preferred_element_type=jnp.float32) + bqkv_ref[0]       # (TB*S, 3*Dh) f32
    q = qkv[:, :Dh].reshape(TB, S, Dh)
    k = qkv[:, Dh:2 * Dh].reshape(TB, S, Dh)
    v = qkv[:, 2 * Dh:].reshape(TB, S, Dh)

    # Scores (batched over TB), softmax kept in f32 (v5e VPU/EUP have no bf16).
    s = jnp.einsum('bqd,bkd->bqk', q.astype(mxu_dtype), k.astype(mxu_dtype),
                   preferred_element_type=jnp.float32)                    # (TB, S, S)
    s = s - jnp.max(s, axis=-1, keepdims=True)
    p = jnp.exp(s)
    p = p * (1.0 / jnp.sum(p, axis=-1, keepdims=True))                    # reciprocal-multiply
    # (attention dropout would apply to p here; inference semantics -> identity)

    ctx = jnp.einsum('bqk,bkd->bqd', p.astype(mxu_dtype), v.astype(mxu_dtype),
                     preferred_element_type=jnp.float32)                  # (TB, S, Dh)
    head_out = jnp.dot(ctx.reshape(TB * S, Dh).astype(mxu_dtype), wo_ref[0],
                       preferred_element_type=jnp.float32).reshape(TB, S, D)

    @pl.when(h == 0)
    def _init():
        out_ref[...] = jnp.broadcast_to(bo_ref[...], out_ref.shape)       # start from bias
        if need_weights:
            wts_ref[...] = jnp.zeros_like(wts_ref)

    out_ref[...] += head_out                                              # f32 head accumulation
    if need_weights:
        wts_ref[...] += p

    @pl.when(h == num_heads - 1)
    def _finalize():
        if need_weights:
            wts_ref[...] *= jnp.float32(1.0 / num_heads)                  # head average


def _pick_batch_block(B, S, D, Dh, need_weights, x_itemsize, w_itemsize, budget):
    """Largest divisor of B whose per-step VMEM fits `budget`, keeping >=2 parallel blocks."""
    best = 1
    for tb in range(1, B + 1):
        if B % tb:
            continue
        per_step = 2 * tb * S * D * x_itemsize           # x block (double-buffered)
        per_step += 2 * tb * S * D * 4                   # out block (f32)
        if need_weights:
            per_step += 2 * tb * S * S * 4               # wts block (f32)
        per_step += 2 * (4 * D * Dh * w_itemsize + 3 * Dh * 4) + 2 * D * 4   # weight blocks
        per_step += tb * S * (6 * Dh + 2 * S + D) * 4    # in-kernel temporaries (rough)
        if per_step <= budget and (B // tb >= 2 or B < 2):
            best = tb
    return best


def multi_head_attention(x, params, num_heads, attn_mask=None, key_padding_mask=None,
                         need_weights=True, compute_dtype=None):
    """Pallas-backed equivalent of the PyTorch module's forward (eval mode)."""
    assert attn_mask is None and key_padding_mask is None  # TODO(synk): mask support
    assert x.dtype == jnp.float32                          # TODO(synk): bf16 in/out would need an acc scratch
    B, S, D = x.shape
    assert D % num_heads == 0
    Dh = D // num_heads
    w_in, b_in, w_out, b_out = params
    scale = 1.0 / math.sqrt(Dh)

    # ---- One-time (loop-invariant) weight preparation in the wrapper ----
    # w_in rows: [0:D]=Q, [D:2D]=K, [2D:3D]=V with output feature index = h*Dh + d.
    def to_heads(w):                        # (D_out, D_in) -> (H, D_in, Dh)
        return jnp.transpose(w.T.reshape(D, num_heads, Dh), (1, 0, 2))

    wq = to_heads(w_in[:D]) * scale         # fold 1/sqrt(Dh) into the Q projection
    wk = to_heads(w_in[D:2 * D])
    wv = to_heads(w_in[2 * D:])
    wqkv = jnp.concatenate([wq, wk, wv], axis=-1)          # (H, D, 3*Dh), fused
    bq = b_in[:D].reshape(num_heads, 1, Dh) * scale
    bk = b_in[D:2 * D].reshape(num_heads, 1, Dh)
    bv = b_in[2 * D:].reshape(num_heads, 1, Dh)
    bqkv = jnp.concatenate([bq, bk, bv], axis=-1)          # (H, 1, 3*Dh), f32
    wo = w_out.T.reshape(num_heads, Dh, D)                 # per-head out-proj slab
    bo = b_out.reshape(1, D)                               # f32

    x_c = x
    if compute_dtype is not None:                          # bf16 MXU path for v6e/v7x
        x_c = x.astype(compute_dtype)
        wqkv = wqkv.astype(compute_dtype)
        wo = wo.astype(compute_dtype)

    vmem_limit = 48 * 1024 * 1024                          # safe on v7x (64 MiB phys), > defaults
    TB = _pick_batch_block(B, S, D, Dh, need_weights,
                           x_c.dtype.itemsize, wqkv.dtype.itemsize,
                           budget=int(0.75 * vmem_limit))

    kernel = partial(_mha_kernel, num_heads=num_heads, need_weights=need_weights)

    # Advisory cost estimate (counts per-batch-block weight refetch + wts writeback).
    flops = 2 * B * (4 * S * D * D + 2 * S * S * D)
    w_bytes = (B // TB) * (4 * D * D * wqkv.dtype.itemsize + 3 * D * 4 + D * 4)
    bytes_accessed = (B * S * D * x_c.dtype.itemsize      # x read
                      + w_bytes                            # weights read per outer step
                      + B * S * D * 4                      # output write
                      + (B * S * S * 4 if need_weights else 0))

    out_shape = [jax.ShapeDtypeStruct((B, S, D), jnp.float32)]
    out_specs = [pl.BlockSpec((TB, S, D), lambda b, h: (b, 0, 0))]        # held across h
    if need_weights:
        out_shape.append(jax.ShapeDtypeStruct((B, S, S), jnp.float32))
        out_specs.append(pl.BlockSpec((TB, S, S), lambda b, h: (b, 0, 0)))

    results = pl.pallas_call(
        kernel,
        out_shape=tuple(out_shape),
        grid_spec=pltpu.PrefetchScalarGridSpec(
            num_scalar_prefetch=0,
            grid=(B // TB, num_heads),
            in_specs=[
                pl.BlockSpec((TB, S, D), lambda b, h: (b, 0, 0)),         # x (batch block)
                pl.BlockSpec((1, D, 3 * Dh), lambda b, h: (h, 0, 0)),     # fused Wqkv (per head)
                pl.BlockSpec((1, 1, 3 * Dh), lambda b, h: (h, 0, 0)),     # fused bqkv
                pl.BlockSpec((1, Dh, D), lambda b, h: (h, 0, 0)),         # Wo (per head)
                pl.BlockSpec((1, D), lambda b, h: (0, 0)),                # bo (shared)
            ],
            out_specs=out_specs,
        ),
        compiler_params=pltpu.CompilerParams(
            dimension_semantics=("parallel", "arbitrary"),
            vmem_limit_bytes=vmem_limit,
        ),
        cost_estimate=pl.CostEstimate(
            flops=int(flops),
            transcendentals=int(B * num_heads * S * S),
            bytes_accessed=int(bytes_accessed),
        ),
    )(x_c, wqkv, bqkv, wo, bo)

    if need_weights:
        return results[0], results[1]
    return results[0], None


def _reference(x, params, num_heads):
    """Pure-JAX reference mirroring nn.MultiheadAttention (eval mode, no masks)."""
    w_in, b_in, w_out, b_out = params
    B, S, D = x.shape
    Dh = D // num_heads
    qkv = jnp.einsum('bsd,ed->bse', x, w_in) + b_in
    q, k, v = qkv[..., :D], qkv[..., D:2 * D], qkv[..., 2 * D:]

    def split(t):
        return t.reshape(B, S, num_heads, Dh).transpose(0, 2, 1, 3)

    q, k, v = split(q), split(k), split(v)
    s = jnp.einsum('bhqd,bhkd->bhqk', q, k) / math.sqrt(Dh)
    p = jax.nn.softmax(s, axis=-1)
    ctx = jnp.einsum('bhqk,bhkd->bhqd', p, v)
    ctx = ctx.transpose(0, 2, 1, 3).reshape(B, S, D)
    out = jnp.einsum('bsd,ed->bse', ctx, w_out) + b_out
    return out, p.mean(axis=1)


def init_params(key, d_model):
    """Deterministic synthetic parameters matching nn.MultiheadAttention shapes."""
    k1, k2 = jax.random.split(key, 2)
    bound_in = math.sqrt(6.0 / (3 * d_model + d_model))   # xavier_uniform on in_proj_weight
    w_in = jax.random.uniform(k1, (3 * d_model, d_model), jnp.float32, -bound_in, bound_in)
    b_in = jnp.zeros((3 * d_model,), jnp.float32)          # PyTorch inits in_proj_bias to 0
    bound_out = 1.0 / math.sqrt(d_model)
    w_out = jax.random.uniform(k2, (d_model, d_model), jnp.float32, -bound_out, bound_out)
    b_out = jnp.zeros((d_model,), jnp.float32)             # out_proj bias inited to 0
    return (w_in, b_in, w_out, b_out)


if __name__ == "__main__":
    B, S, D, H = 2, 8, 32, 4   # batch, seq, d_model, num_heads

    key = jax.random.PRNGKey(0)
    kx, kp = jax.random.split(key)
    x = jax.random.normal(kx, (B, S, D), dtype=jnp.float32)
    params = init_params(kp, D)

    out, attn_w = multi_head_attention(x, params, H)
    out = jax.block_until_ready(out)
    attn_w = jax.block_until_ready(attn_w)

    ref_out, ref_w = _reference(x, params, H)
    assert out.shape == (B, S, D) and attn_w.shape == (B, S, S)
    assert jnp.allclose(out, ref_out, atol=1e-5, rtol=1e-5)
    assert jnp.allclose(attn_w, ref_w, atol=1e-5, rtol=1e-5)

    # Exercise the no-weights variant (drops the (B,S,S) writeback entirely).
    out2, none_w = multi_head_attention(x, params, H, need_weights=False)
    out2 = jax.block_until_ready(out2)
    assert none_w is None
    assert jnp.allclose(out2, ref_out, atol=1e-5, rtol=1e-5)

    print("KERNEL_OK")
</pallas_src>

<mosaic_0001>
module attributes {stable_mosaic.version = 11 : i64} {
  func.func @_mha_kernel(%arg0: i32, %arg1: i32, %arg2: memref<1x8x32xf32, #tpu.memory_space<vmem>>, %arg3: memref<1x32x24xf32, #tpu.memory_space<vmem>>, %arg4: memref<1x1x24xf32, #tpu.memory_space<vmem>>, %arg5: memref<1x8x32xf32, #tpu.memory_space<vmem>>, %arg6: memref<1x32xf32, #tpu.memory_space<vmem>>, %arg7: memref<1x8x32xf32, #tpu.memory_space<vmem>>, %arg8: memref<1x8x8xf32, #tpu.memory_space<vmem>>) attributes {dimension_semantics = [#tpu.dimension_semantics<parallel>, #tpu.dimension_semantics<arbitrary>], iteration_bounds = array<i64: 2, 4>, scalar_prefetch = 0 : i64, scratch_operands = 0 : i64, tpu.core_type = #tpu.core_type<tc>, window_params = [{transform_indices = @transform_0, window_bounds = array<i64: 1, 8, 32>}, {transform_indices = @transform_1, window_bounds = array<i64: 1, 32, 24>}, {transform_indices = @transform_2, window_bounds = array<i64: 1, 1, 24>}, {transform_indices = @transform_3, window_bounds = array<i64: 1, 8, 32>}, {pipeline_mode = #tpu.pipeline_mode<synchronous>, transform_indices = @transform_4, window_bounds = array<i64: 1, 32>}, {transform_indices = @transform_5, window_bounds = array<i64: 1, 8, 32>}, {transform_indices = @transform_6, window_bounds = array<i64: 1, 8, 8>}]} {
    %c0 = arith.constant 0 : index
    %c0_0 = arith.constant 0 : index
    %c0_1 = arith.constant 0 : index
    %0 = vector.load %arg2[%c0, %c0_0, %c0_1] : memref<1x8x32xf32, #tpu.memory_space<vmem>>, vector<1x8x32xf32>
    %1 = vector.shape_cast %0 : vector<1x8x32xf32> to vector<8x32xf32>
    %c0_2 = arith.constant 0 : index
    %c0_3 = arith.constant 0 : index
    %c0_4 = arith.constant 0 : index
    %2 = vector.load %arg3[%c0_2, %c0_3, %c0_4] : memref<1x32x24xf32, #tpu.memory_space<vmem>>, vector<1x32x24xf32>
    %3 = vector.shape_cast %2 : vector<1x32x24xf32> to vector<32x24xf32>
    %cst = arith.constant dense<0.000000e+00> : vector<8x24xf32>
    %4 = tpu.matmul %1, %3, %cst {dimension_numbers = #tpu.dot_dimension_numbers<[1], [0], [0], [1], [0, 0, 1, 1], [], []>} : vector<8x32xf32>, vector<32x24xf32>, vector<8x24xf32> -> vector<8x24xf32>
    %c0_5 = arith.constant 0 : index
    %c0_6 = arith.constant 0 : index
    %c0_7 = arith.constant 0 : index
    %5 = vector.load %arg4[%c0_5, %c0_6, %c0_7] : memref<1x1x24xf32, #tpu.memory_space<vmem>>, vector<1x1x24xf32>
    %6 = vector.shape_cast %5 : vector<1x1x24xf32> to vector<1x24xf32>
    %7 = vector.broadcast %6 : vector<1x24xf32> to vector<8x24xf32>
    %8 = arith.addf %4, %7 : vector<8x24xf32>
    %9 = vector.extract_strided_slice %8 {offsets = [0, 0], sizes = [8, 8], strides = [1, 1]} : vector<8x24xf32> to vector<8x8xf32>
    %10 = vector.shape_cast %9 : vector<8x8xf32> to vector<1x8x8xf32>
    %11 = vector.extract_strided_slice %8 {offsets = [0, 8], sizes = [8, 8], strides = [1, 1]} : vector<8x24xf32> to vector<8x8xf32>
    %12 = vector.shape_cast %11 : vector<8x8xf32> to vector<1x8x8xf32>
    %13 = vector.extract_strided_slice %8 {offsets = [0, 16], sizes = [8, 8], strides = [1, 1]} : vector<8x24xf32> to vector<8x8xf32>
    %14 = vector.shape_cast %13 : vector<8x8xf32> to vector<1x8x8xf32>
    "tpu.trace_start"() <{level = 10 : i32, message = "bqd,bkd->bqk"}> : () -> ()
    %cst_8 = arith.constant dense<0.000000e+00> : vector<1x8x8xf32>
    %15 = tpu.matmul %10, %12, %cst_8 {dimension_numbers = #tpu.dot_dimension_numbers<[2], [2], [1], [1], [0, 0, 0, 1, 1, 1], [0], [0]>} : vector<1x8x8xf32>, vector<1x8x8xf32>, vector<1x8x8xf32> -> vector<1x8x8xf32>
    "tpu.trace_stop"() : () -> ()
    %cst_9 = arith.constant dense<0xFF800000> : vector<1x8xf32>
    %16 = vector.multi_reduction <maximumf>, %15, %cst_9 [2] : vector<1x8x8xf32> to vector<1x8xf32>
    %17 = vector.shape_cast %16 : vector<1x8xf32> to vector<1x8x1xf32>
    %18 = vector.broadcast %17 : vector<1x8x1xf32> to vector<1x8x8xf32>
    %19 = arith.subf %15, %18 : vector<1x8x8xf32>
    %20 = math.exp %19 : vector<1x8x8xf32>
    %cst_10 = arith.constant dense<0.000000e+00> : vector<1x8xf32>
    %21 = vector.multi_reduction <add>, %20, %cst_10 [2] : vector<1x8x8xf32> to vector<1x8xf32>
    %22 = vector.shape_cast %21 : vector<1x8xf32> to vector<1x8x1xf32>
    %cst_11 = arith.constant 1.000000e+00 : f32
    %23 = vector.broadcast %cst_11 : f32 to vector<1x8x1xf32>
    %24 = arith.divf %23, %22 : vector<1x8x1xf32>
    %25 = vector.broadcast %24 : vector<1x8x1xf32> to vector<1x8x8xf32>
    %26 = arith.mulf %20, %25 : vector<1x8x8xf32>
    "tpu.trace_start"() <{level = 10 : i32, message = "bqk,bkd->bqd"}> : () -> ()
    %cst_12 = arith.constant dense<0.000000e+00> : vector<1x8x8xf32>
    %27 = tpu.matmul %26, %14, %cst_12 {dimension_numbers = #tpu.dot_dimension_numbers<[2], [1], [1], [2], [0, 0, 0, 1, 1, 2], [0], [0]>} : vector<1x8x8xf32>, vector<1x8x8xf32>, vector<1x8x8xf32> -> vector<1x8x8xf32>
    "tpu.trace_stop"() : () -> ()
    %28 = vector.shape_cast %27 : vector<1x8x8xf32> to vector<8x8xf32>
    %c0_13 = arith.constant 0 : index
    %c0_14 = arith.constant 0 : index
    %c0_15 = arith.constant 0 : index
    %29 = vector.load %arg5[%c0_13, %c0_14, %c0_15] : memref<1x8x32xf32, #tpu.memory_space<vmem>>, vector<1x8x32xf32>
    %30 = vector.shape_cast %29 : vector<1x8x32xf32> to vector<8x32xf32>
    %cst_16 = arith.constant dense<0.000000e+00> : vector<8x32xf32>
    %31 = tpu.matmul %28, %30, %cst_16 {dimension_numbers = #tpu.dot_dimension_numbers<[1], [0], [0], [1], [0, 0, 1, 1], [], []>} : vector<8x8xf32>, vector<8x32xf32>, vector<8x32xf32> -> vector<8x32xf32>
    %32 = vector.shape_cast %31 : vector<8x32xf32> to vector<1x8x32xf32>
    %c0_i32 = arith.constant 0 : i32
    %33 = arith.cmpi eq, %arg1, %c0_i32 : i32
    %34 = arith.extui %33 : i1 to i32
    %c0_i32_17 = arith.constant 0 : i32
    %35 = arith.cmpi ne, %34, %c0_i32_17 : i32
    scf.if %35 {
      %c0_31 = arith.constant 0 : index
      %c0_32 = arith.constant 0 : index
      %45 = vector.load %arg6[%c0_31, %c0_32] : memref<1x32xf32, #tpu.memory_space<vmem>>, vector<1x32xf32>
      %46 = vector.shape_cast %45 : vector<1x32xf32> to vector<1x1x32xf32>
      %47 = vector.broadcast %46 : vector<1x1x32xf32> to vector<1x8x32xf32>
      %c0_33 = arith.constant 0 : index
      %c0_34 = arith.constant 0 : index
      %c0_35 = arith.constant 0 : index
      %48 = vector.load %arg7[%c0_33, %c0_34, %c0_35] : memref<1x8x32xf32, #tpu.memory_space<vmem>>, vector<1x8x32xf32>
      tpu.vector_store %arg7[%c0_33, %c0_34, %c0_35], %47 {strides = array<i32>} : memref<1x8x32xf32, #tpu.memory_space<vmem>>, vector<1x8x32xf32>,
      %cst_36 = arith.constant 0.000000e+00 : f32
      %49 = vector.broadcast %cst_36 : f32 to vector<1x8x8xf32>
      %c0_37 = arith.constant 0 : index
      %c0_38 = arith.constant 0 : index
      %c0_39 = arith.constant 0 : index
      %50 = vector.load %arg8[%c0_37, %c0_38, %c0_39] : memref<1x8x8xf32, #tpu.memory_space<vmem>>, vector<1x8x8xf32>
      tpu.vector_store %arg8[%c0_37, %c0_38, %c0_39], %49 {strides = array<i32>} : memref<1x8x8xf32, #tpu.memory_space<vmem>>, vector<1x8x8xf32>,
    } else {
    }
    %c0_18 = arith.constant 0 : index
    %c0_19 = arith.constant 0 : index
    %c0_20 = arith.constant 0 : index
    %36 = vector.load %arg7[%c0_18, %c0_19, %c0_20] : memref<1x8x32xf32, #tpu.memory_space<vmem>>, vector<1x8x32xf32>
    %37 = arith.addf %36, %32 : vector<1x8x32xf32>
    %c0_21 = arith.constant 0 : index
    %c0_22 = arith.constant 0 : index
    %c0_23 = arith.constant 0 : index
    %38 = vector.load %arg7[%c0_21, %c0_22, %c0_23] : memref<1x8x32xf32, #tpu.memory_space<vmem>>, vector<1x8x32xf32>
    tpu.vector_store %arg7[%c0_21, %c0_22, %c0_23], %37 {strides = array<i32>} : memref<1x8x32xf32, #tpu.memory_space<vmem>>, vector<1x8x32xf32>,
    %c0_24 = arith.constant 0 : index
    %c0_25 = arith.constant 0 : index
    %c0_26 = arith.constant 0 : index
    %39 = vector.load %arg8[%c0_24, %c0_25, %c0_26] : memref<1x8x8xf32, #tpu.memory_space<vmem>>, vector<1x8x8xf32>
    %40 = arith.addf %39, %26 : vector<1x8x8xf32>
    %c0_27 = arith.constant 0 : index
    %c0_28 = arith.constant 0 : index
    %c0_29 = arith.constant 0 : index
    %41 = vector.load %arg8[%c0_27, %c0_28, %c0_29] : memref<1x8x8xf32, #tpu.memory_space<vmem>>, vector<1x8x8xf32>
    tpu.vector_store %arg8[%c0_27, %c0_28, %c0_29], %40 {strides = array<i32>} : memref<1x8x8xf32, #tpu.memory_space<vmem>>, vector<1x8x8xf32>,
    %c3_i32 = arith.constant 3 : i32
    %42 = arith.cmpi eq, %arg1, %c3_i32 : i32
    %43 = arith.extui %42 : i1 to i32
    %c0_i32_30 = arith.constant 0 : i32
    %44 = arith.cmpi ne, %43, %c0_i32_30 : i32
    scf.if %44 {
      %c0_31 = arith.constant 0 : index
      %c0_32 = arith.constant 0 : index
      %c0_33 = arith.constant 0 : index
      %45 = vector.load %arg8[%c0_31, %c0_32, %c0_33] : memref<1x8x8xf32, #tpu.memory_space<vmem>>, vector<1x8x8xf32>
      %cst_34 = arith.constant 2.500000e-01 : f32
      %46 = vector.broadcast %cst_34 : f32 to vector<1x8x8xf32>
      %47 = arith.mulf %45, %46 : vector<1x8x8xf32>
      %c0_35 = arith.constant 0 : index
      %c0_36 = arith.constant 0 : index
      %c0_37 = arith.constant 0 : index
      %48 = vector.load %arg8[%c0_35, %c0_36, %c0_37] : memref<1x8x8xf32, #tpu.memory_space<vmem>>, vector<1x8x8xf32>
      tpu.vector_store %arg8[%c0_35, %c0_36, %c0_37], %47 {strides = array<i32>} : memref<1x8x8xf32, #tpu.memory_space<vmem>>, vector<1x8x8xf32>,
    } else {
    }
    return
  }
  func.func @transform_0(%arg0: i32, %arg1: i32) -> (i32, i32, i32) {
    %c0_i32 = arith.constant 0 : i32
    %c0_i32_0 = arith.constant 0 : i32
    %c0_i32_1 = arith.constant 0 : i32
    return %arg0, %c0_i32, %c0_i32_0 : i32, i32, i32
  }
  func.func @transform_1(%arg0: i32, %arg1: i32) -> (i32, i32, i32) {
    %c0_i32 = arith.constant 0 : i32
    %c0_i32_0 = arith.constant 0 : i32
    %c0_i32_1 = arith.constant 0 : i32
    return %arg1, %c0_i32, %c0_i32_0 : i32, i32, i32
  }
  func.func @transform_2(%arg0: i32, %arg1: i32) -> (i32, i32, i32) {
    %c0_i32 = arith.constant 0 : i32
    %c0_i32_0 = arith.constant 0 : i32
    %c0_i32_1 = arith.constant 0 : i32
    return %arg1, %c0_i32, %c0_i32_0 : i32, i32, i32
  }
  func.func @transform_3(%arg0: i32, %arg1: i32) -> (i32, i32, i32) {
    %c0_i32 = arith.constant 0 : i32
    %c0_i32_0 = arith.constant 0 : i32
    %c0_i32_1 = arith.constant 0 : i32
    return %arg1, %c0_i32, %c0_i32_0 : i32, i32, i32
  }
  func.func @transform_4(%arg0: i32, %arg1: i32) -> (i32, i32) {
    %c0_i32 = arith.constant 0 : i32
    %c0_i32_0 = arith.constant 0 : i32
    %c0_i32_1 = arith.constant 0 : i32
    return %c0_i32, %c0_i32_0 : i32, i32
  }
  func.func @transform_5(%arg0: i32, %arg1: i32) -> (i32, i32, i32) {
    %c0_i32 = arith.constant 0 : i32
    %c0_i32_0 = arith.constant 0 : i32
    %c0_i32_1 = arith.constant 0 : i32
    return %arg0, %c0_i32, %c0_i32_0 : i32, i32, i32
  }
  func.func @transform_6(%arg0: i32, %arg1: i32) -> (i32, i32, i32) {
    %c0_i32 = arith.constant 0 : i32
    %c0_i32_0 = arith.constant 0 : i32
    %c0_i32_1 = arith.constant 0 : i32
    return %arg0, %c0_i32, %c0_i32_0 : i32, i32, i32
  }
}

</mosaic_0001>

<llo_original>
// kernel: tpu_custom_call.1
$region0: #{tpu_custom_call.1}
  #allocation0 [shape = 'u32[]', space=smem, size = 0x4, offset = 0x4, fixed_abs, tag = 'smem constant byte address 0x4 - core index']
  #allocation1 [shape = 'u32[72,128]{1,0:T(1,128)}', space=vmem, size = 0x9000, scoped, tag = 'internal scratch']
  %s0 = inlined_call_operand.vmem [shape: f32[2,8,32], index: 0, kind: input, shape index: {}]
  %s1 = inlined_call_operand.vmem [shape: f32[4,32,24], index: 1, kind: input, shape index: {}]
  %s2 = inlined_call_operand.vmem [shape: f32[4,1,24], index: 2, kind: input, shape index: {}]
  %s3 = inlined_call_operand.vmem [shape: f32[4,8,32], index: 3, kind: input, shape index: {}]
  %s4 = inlined_call_operand.vmem [shape: f32[1,32], index: 4, kind: input, shape index: {}]
  %s5 = inlined_call_operand.hbm [shape: f32[2,8,32], index: 5, kind: output, shape index: {0}]
  %s6 = inlined_call_operand.hbm [shape: f32[2,8,8], index: 6, kind: output, shape index: {1}]
  %7 = xla_tuple %s5, %s6
  %s8 = sld [smem:[#allocation0]]
  $region69: #{tpu_custom_call.1} parent=0
    _
  %s10 = ssub.s32 1, %s8
  %s11 = scalar_select 0, %s10, %s8
  $region1: #{tpu_custom_call.1} parent=0
    #allocation2 [shape = 'u8[8192]{0}', space=vmem, size = 0x2000, scoped, tag = 'output window, operand 0']
    #allocation3 [shape = 's32[2]{0}', space=sflag, size = 0x8, scoped, tag = 'scoped memory for tpu_custom_call.1']
    #allocation4 [shape = 'u8[8192]{0}', space=vmem, size = 0x2000, scoped, tag = 'output window, operand 1']
    #allocation5 [shape = 's32[2]{0}', space=sflag, size = 0x8, scoped, tag = 'scoped memory for tpu_custom_call.1']
    %12 = vsyncpa [#allocation3], 0
    %s13 = scalar_lea.sflag [#allocation3], 1
    %14 = vsyncpa %s13, 0
    %15 = vsyncpa [#allocation5], 0
    %s16 = scalar_lea.sflag [#allocation5], 1
    %17 = vsyncpa %s16, 0
    loop: start=0, step=1, limit=10
    $region2: #{tpu_custom_call.1} parent=1 // loop_pre_header
      _
    $region3: #{tpu_custom_call.1} parent=1 // loop_header
      %s19 = sphi 0, %s23
      %p20 = scmp.ge.s32.totalorder %s19, 10
      %s26 = sphi 0, %s38
      %s27 = sphi 0, %s34
      %s28 = sphi 0, %s26
      %s29 = sphi 0, %s27
      %s30 = sphi 0, %s28
      %s31 = sphi 0, %s29
      %s41 = sphi 0, %s43
      %s44 = sphi 0, %s41
      %s45 = sphi 0, %s44
      %s61 = sphi 0, %s45
      %s67 = sphi 0, %s69
      %s70 = sphi 0, %s67
      %s71 = sphi 0, %s70
      %s87 = sphi 0, %s71
      %s93 = sphi 0, %s95
      %s96 = sphi 0, %s93
      %s97 = sphi 0, %s96
      %s113 = sphi 0, %s97
      %s119 = sphi 0, %s121
      %s122 = sphi 0, %s119
      %s123 = sphi 0, %s122
      %s139 = sphi 0, %s123
      %s143 = sphi 0, %s143
      %s145 = sphi 0, %s143
      %s146 = sphi 0, %s145
      %s160 = sphi 0, %s146
      %s166 = sphi 0, %s168
      %s169 = sphi 0, %s166
      %s170 = sphi 0, %s169
      %s186 = sphi 0, %s170
      %s192 = sphi 0, %s194
      %s195 = sphi 0, %s192
      %s196 = sphi 0, %s195
      %s212 = sphi 0, %s196
    $region4: #{tpu_custom_call.1} parent=1 // loop_header_branch
      %22 = sbr.rel (%p20) target = $region8
    $region5: #{tpu_custom_call.1} parent=1 // loop_body
      %s24 = ssub.s32 %s19, 1
      %s25 = ssub.s32 %s19, 2
      %s32 = sadd.s32 1, %s27
      %p33 = scmp.ge.s32.totalorder %s32, 4
      %s34 = scalar_select %p33, 0, %s32
      %s35 = sadd.s32 1, %s26
      %s36 = scalar_select %p33, %s35, %s26
      %p37 = scmp.ge.s32.totalorder %s36, 2
      %s38 = scalar_select %p37, 0, %s36
      %s39 = ssub.s32 %s26, %s38
      %p40 = scmp.eq.s32.totalorder %s39, 0
      %s42 = sadd.s32 %s41, 1
      %s43 = scalar_select %p40, %s41, %s42
      %p46 = pneg %p40
      %p47 = scmp.eq.s32.totalorder %s19, 7
      %p48 = por %p46, %p47
      %p49 = scmp.ne.s32.totalorder %s41, %s44
      %p50 = scmp.eq.s32.totalorder %s19, 0
      %p51 = por %p49, %p50
      %p52 = scmp.ne.s32.totalorder %s41, %s44
      %p53 = scmp.eq.s32.totalorder %s24, 7
      %p54 = por %p52, %p53
      %p55 = scmp.ne.s32.totalorder %s44, %s45
      %p56 = scmp.eq.s32.totalorder %s24, 0
      %p57 = por %p55, %p56
      %p58 = scmp.ne.s32.totalorder %s44, %s45
      %p59 = scmp.eq.s32.totalorder %s25, 7
      %p60 = por %p58, %p59
      %p62 = scmp.ne.s32.totalorder %s45, %s61
      %p63 = scmp.eq.s32.totalorder %s25, 0
      %p64 = por %p62, %p63
      %s65 = ssub.s32 %s27, %s34
      %p66 = scmp.eq.s32.totalorder %s65, 0
      %s68 = sadd.s32 %s67, 1
      %s69 = scalar_select %p66, %s67, %s68
      %p72 = pneg %p66
      %p73 = scmp.eq.s32.totalorder %s19, 7
      %p74 = por %p72, %p73
      %p75 = scmp.ne.s32.totalorder %s67, %s70
      %p76 = scmp.eq.s32.totalorder %s19, 0
      %p77 = por %p75, %p76
      %p78 = scmp.ne.s32.totalorder %s67, %s70
      %p79 = scmp.eq.s32.totalorder %s24, 7
      %p80 = por %p78, %p79
      %p81 = scmp.ne.s32.totalorder %s70, %s71
      %p82 = scmp.eq.s32.totalorder %s24, 0
      %p83 = por %p81, %p82
      %p84 = scmp.ne.s32.totalorder %s70, %s71
      %p85 = scmp.eq.s32.totalorder %s25, 7
      %p86 = por %p84, %p85
      %p88 = scmp.ne.s32.totalorder %s71, %s87
      %p89 = scmp.eq.s32.totalorder %s25, 0
      %p90 = por %p88, %p89
      %s91 = ssub.s32 %s27, %s34
      %p92 = scmp.eq.s32.totalorder %s91, 0
      %s94 = sadd.s32 %s93, 1
      %s95 = scalar_select %p92, %s93, %s94
      %p98 = pneg %p92
      %p99 = scmp.eq.s32.totalorder %s19, 7
      %p100 = por %p98, %p99
      %p101 = scmp.ne.s32.totalorder %s93, %s96
      %p102 = scmp.eq.s32.totalorder %s19, 0
      %p103 = por %p101, %p102
      %p104 = scmp.ne.s32.totalorder %s93, %s96
      %p105 = scmp.eq.s32.totalorder %s24, 7
      %p106 = por %p104, %p105
      %p107 = scmp.ne.s32.totalorder %s96, %s97
      %p108 = scmp.eq.s32.totalorder %s24, 0
      %p109 = por %p107, %p108
      %p110 = scmp.ne.s32.totalorder %s96, %s97
      %p111 = scmp.eq.s32.totalorder %s25, 7
      %p112 = por %p110, %p111
      %p114 = scmp.ne.s32.totalorder %s97, %s113
      %p115 = scmp.eq.s32.totalorder %s25, 0
      %p116 = por %p114, %p115
      %s117 = ssub.s32 %s27, %s34
      %p118 = scmp.eq.s32.totalorder %s117, 0
      %s120 = sadd.s32 %s119, 1
      %s121 = scalar_select %p118, %s119, %s120
      %p124 = pneg %p118
      %p125 = scmp.eq.s32.totalorder %s19, 7
      %p126 = por %p124, %p125
      %p127 = scmp.ne.s32.totalorder %s119, %s122
      %p128 = scmp.eq.s32.totalorder %s19, 0
      %p129 = por %p127, %p128
      %p130 = scmp.ne.s32.totalorder %s119, %s122
      %p131 = scmp.eq.s32.totalorder %s24, 7
      %p132 = por %p130, %p131
      %p133 = scmp.ne.s32.totalorder %s122, %s123
      %p134 = scmp.eq.s32.totalorder %s24, 0
      %p135 = por %p133, %p134
      %p136 = scmp.ne.s32.totalorder %s122, %s123
      %p137 = scmp.eq.s32.totalorder %s25, 7
      %p138 = por %p136, %p137
      %p140 = scmp.ne.s32.totalorder %s123, %s139
      %p141 = scmp.eq.s32.totalorder %s25, 0
      %p142 = por %p140, %p141
      %s144 = sadd.s32 %s143, 1
      %p147 = scmp.eq.s32.totalorder %s19, 7
      %p148 = scmp.ne.s32.totalorder %s143, %s145
      %p149 = scmp.eq.s32.totalorder %s19, 0
      %p150 = por %p148, %p149
      %p151 = scmp.ne.s32.totalorder %s143, %s145
      %p152 = scmp.eq.s32.totalorder %s24, 7
      %p153 = por %p151, %p152
      %p154 = scmp.ne.s32.totalorder %s145, %s146
      %p155 = scmp.eq.s32.totalorder %s24, 0
      %p156 = por %p154, %p155
      %p157 = scmp.ne.s32.totalorder %s145, %s146
      %p158 = scmp.eq.s32.totalorder %s25, 7
      %p159 = por %p157, %p158
      %p161 = scmp.ne.s32.totalorder %s146, %s160
      %p162 = scmp.eq.s32.totalorder %s25, 0
      %p163 = por %p161, %p162
      %s164 = ssub.s32 %s26, %s38
      %p165 = scmp.eq.s32.totalorder %s164, 0
      %s167 = sadd.s32 %s166, 1
      %s168 = scalar_select %p165, %s166, %s167
      %p171 = pneg %p165
      %p172 = scmp.eq.s32.totalorder %s19, 7
      %p173 = por %p171, %p172
      %p174 = scmp.ne.s32.totalorder %s166, %s169
      %p175 = scmp.eq.s32.totalorder %s19, 0
      %p176 = por %p174, %p175
      %p177 = scmp.ne.s32.totalorder %s166, %s169
      %p178 = scmp.eq.s32.totalorder %s24, 7
      %p179 = por %p177, %p178
      %p180 = scmp.ne.s32.totalorder %s169, %s170
      %p181 = scmp.eq.s32.totalorder %s24, 0
      %p182 = por %p180, %p181
      %p183 = scmp.ne.s32.totalorder %s169, %s170
      %p184 = scmp.eq.s32.totalorder %s25, 7
      %p185 = por %p183, %p184
      %p187 = scmp.ne.s32.totalorder %s170, %s186
      %p188 = scmp.eq.s32.totalorder %s25, 0
      %p189 = por %p187, %p188
      %s190 = ssub.s32 %s26, %s38
      %p191 = scmp.eq.s32.totalorder %s190, 0
      %s193 = sadd.s32 %s192, 1
      %s194 = scalar_select %p191, %s192, %s193
      %p197 = pneg %p191
      %p198 = scmp.eq.s32.totalorder %s19, 7
      %p199 = por %p197, %p198
      %p200 = scmp.ne.s32.totalorder %s192, %s195
      %p201 = scmp.eq.s32.totalorder %s19, 0
      %p202 = por %p200, %p201
      %p203 = scmp.ne.s32.totalorder %s192, %s195
      %p204 = scmp.eq.s32.totalorder %s24, 7
      %p205 = por %p203, %p204
      %p206 = scmp.ne.s32.totalorder %s195, %s196
      %p207 = scmp.eq.s32.totalorder %s24, 0
      %p208 = por %p206, %p207
      %p209 = scmp.ne.s32.totalorder %s195, %s196
      %p210 = scmp.eq.s32.totalorder %s25, 7
      %p211 = por %p209, %p210
      %p213 = scmp.ne.s32.totalorder %s196, %s212
      %p214 = scmp.eq.s32.totalorder %s25, 0
      %p215 = por %p213, %p214
      %p216 = scmp.le.s32.totalorder 1, %s19
      %p217 = scmp.lt.s32.totalorder %s19, 9
      %p218 = pnand %p216, %p217
      %p219 = pneg %p218
      // Predicated region
      $region9: #{tpu_custom_call.1} parent=5 // pred_check
        _
      $region10: #{tpu_custom_call.1} parent=5 // pred_check_branch
        %221 = sbr.rel (%p218) target = $region12
      $region11: #{tpu_custom_call.1} parent=5 // pred_region
        %s222 = ssub.s32 %s19, 1
        // Predicated region
        $region13: #{tpu_custom_call.1} parent=11 // pred_check
          %p223 = pneg %p156
        $region14: #{tpu_custom_call.1} parent=11 // pred_check_branch
          %225 = sbr.rel (%p223) target = $region16
        $region15: #{tpu_custom_call.1} parent=11 // pred_region
          _
        $region16: #{tpu_custom_call.1} parent=11 // pred_fallthru
          _
      $region12: #{tpu_custom_call.1} parent=5 // pred_fallthru
        _
      %p226 = scmp.lt.s32.totalorder %s19, 8
      // Predicated region
      $region17: #{tpu_custom_call.1} parent=5 // pred_check
        %p227 = pneg %p226
      $region18: #{tpu_custom_call.1} parent=5 // pred_check_branch
        %229 = sbr.rel (%p227) target = $region20
      $region19: #{tpu_custom_call.1} parent=5 // pred_region
        // Predicated region
        $region21: #{tpu_custom_call.1} parent=19 // pred_check
          %p230 = pneg %p51
        $region22: #{tpu_custom_call.1} parent=19 // pred_check_branch
          %232 = sbr.rel (%p230) target = $region24
        $region23: #{tpu_custom_call.1} parent=19 // pred_region
          %p233 = scmp.lt.s32.totalorder %s26, 1
          %s234 = scalar_select %p233, %s26, 1
          %s235 = smul.addr %s234, 8
          %s236 = scalar_lea.vmem %s0, %s235
        $region24: #{tpu_custom_call.1} parent=19 // pred_fallthru
          _
        // Predicated region
        $region25: #{tpu_custom_call.1} parent=19 // pred_check
          %p237 = pneg %p77
        $region26: #{tpu_custom_call.1} parent=19 // pred_check_branch
          %239 = sbr.rel (%p237) target = $region28
        $region27: #{tpu_custom_call.1} parent=19 // pred_region
          %p240 = scmp.lt.s32.totalorder %s27, 3
          %s241 = scalar_select %p240, %s27, 3
          %s242 = smul.addr %s241, 4
          %s243 = smul.addr %s242, 8
          %s244 = scalar_lea.vmem %s1, %s243
        $region28: #{tpu_custom_call.1} parent=19 // pred_fallthru
          _
        // Predicated region
        $region29: #{tpu_custom_call.1} parent=19 // pred_check
          %p245 = pneg %p103
        $region30: #{tpu_custom_call.1} parent=19 // pred_check_branch
          %247 = sbr.rel (%p245) target = $region32
        $region31: #{tpu_custom_call.1} parent=19 // pred_region
          %p248 = scmp.lt.s32.totalorder %s27, 3
          %s249 = scalar_select %p248, %s27, 3
          %s250 = scalar_lea.vmem %s2, %s249
        $region32: #{tpu_custom_call.1} parent=19 // pred_fallthru
          _
        // Predicated region
        $region33: #{tpu_custom_call.1} parent=19 // pred_check
          %p251 = pneg %p129
        $region34: #{tpu_custom_call.1} parent=19 // pred_check_branch
          %253 = sbr.rel (%p251) target = $region36
        $region35: #{tpu_custom_call.1} parent=19 // pred_region
          %p254 = scmp.lt.s32.totalorder %s27, 3
          %s255 = scalar_select %p254, %s27, 3
          %s256 = smul.addr %s255, 8
          %s257 = scalar_lea.vmem %s3, %s256
        $region36: #{tpu_custom_call.1} parent=19 // pred_fallthru
          _
      $region20: #{tpu_custom_call.1} parent=5 // pred_fallthru
        _
      %p258 = scmp.le.s32.totalorder 1, %s19
      %p259 = scmp.lt.s32.totalorder %s19, 9
      %p260 = pnand %p258, %p259
      %p261 = pneg %p260
      // Predicated region
      $region37: #{tpu_custom_call.1} parent=5 // pred_check
        _
      $region38: #{tpu_custom_call.1} parent=5 // pred_check_branch
        %263 = sbr.rel (%p260) target = $region40
      $region39: #{tpu_custom_call.1} parent=5 // pred_region
        %s264 = ssub.s32 %s19, 1
        %p265 = scmp.lt.s32.totalorder %s28, 1
        %s266 = scalar_select %p265, %s28, 1
        %s267 = smul.addr %s266, 8
        %s268 = scalar_lea.vmem %s0, %s267
        %p269 = pneg %p57
        %p270 = pneg %p54
        %p271 = scmp.lt.s32.totalorder %s29, 3
        %s272 = scalar_select %p271, %s29, 3
        %s273 = smul.addr %s272, 4
        %s274 = smul.addr %s273, 8
        %s275 = scalar_lea.vmem %s1, %s274
        %p276 = pneg %p83
        %p277 = pneg %p80
        %p278 = scmp.lt.s32.totalorder %s29, 3
        %s279 = scalar_select %p278, %s29, 3
        %s280 = scalar_lea.vmem %s2, %s279
        %p281 = pneg %p109
        %p282 = pneg %p106
        %p283 = scmp.lt.s32.totalorder %s29, 3
        %s284 = scalar_select %p283, %s29, 3
        %s285 = smul.addr %s284, 8
        %s286 = scalar_lea.vmem %s3, %s285
        %p287 = pneg %p135
        %p288 = pneg %p132
        %p289 = pneg %p156
        %p290 = pneg %p153
        %p291 = pneg %p182
        %p292 = pneg %p179
        %s293 = sand.u32 %s169, 1
        %s294 = scalar_lea.sflag [#allocation3], %s293
        %s295 = sand.u32 %s169, 1
        %s296 = smul.addr %s295, 8
        %s297 = scalar_lea.vmem [#allocation2], %s296
        %p298 = pneg %p208
        %p299 = pneg %p205
        %s300 = sand.u32 %s195, 1
        %s301 = scalar_lea.sflag [#allocation5], %s300
        %s302 = sand.u32 %s195, 1
        %s303 = smul.addr %s302, 8
        %s304 = scalar_lea.vmem [#allocation4], %s303
        %p305 = scmp.lt.s32.totalorder %s28, 1
        %s306 = scalar_select %p305, %s28, 1
        %s307 = smul.addr %s306, 8
        %s308 = scalar_lea.vmem %s0, %s307
        %p309 = scmp.lt.s32.totalorder %s29, 3
        %s310 = scalar_select %p309, %s29, 3
        %s311 = smul.addr %s310, 4
        %s312 = smul.addr %s311, 8
        %s313 = scalar_lea.vmem %s1, %s312
        %p314 = scmp.lt.s32.totalorder %s29, 3
        %s315 = scalar_select %p314, %s29, 3
        %s316 = scalar_lea.vmem %s2, %s315
        %p317 = scmp.lt.s32.totalorder %s29, 3
        %s318 = scalar_select %p317, %s29, 3
        %s319 = smul.addr %s318, 8
        %s320 = scalar_lea.vmem %s3, %s319
        %v321 = vld [vmem:[%s308] sm:$0xff]
        %v322 = vld [vmem:[%s313] sm:$0xff]
        %v323 = vld [vmem:[%s313 + $0x8] sm:$0xff]
        %v324 = vld [vmem:[%s313 + $0x10] sm:$0xff]
        %v325 = vld [vmem:[%s313 + $0x18] sm:$0xff]
        %v326 = vld [vmem:[%s316] sm:$0x1]
        %v328 = vperm.slane %v326, 0
        %vm330 = vcmask 261120
        %v332 = vsel %vm330, %v321, 0
        %334 = vmatpush.msra.mxu0 0.0
        %335 = vmatpush.msra.mxu0 0.0
        %336 = vmatpush.msra.mxu0 0.0
        %337 = vmatpush.msra.mxu0 0.0
        %338 = vmatpush.msra.mxu0 0.0
        %339 = vmatpush.msra.mxu0 0.0
        %340 = vmatpush.msra.mxu0 0.0
        %341 = vmatpush.msra.mxu0 0.0
        %342 = vmatpush.msra.mxu0 0.0
        %343 = vmatpush.msra.mxu0 0.0
        %344 = vmatpush.msra.mxu0 0.0
        %345 = vmatpush.msra.mxu0 0.0
        %346 = vmatpush.msra.mxu0 %v325
        %347 = vmatpush.msra.mxu0 %v324
        %348 = vmatpush.msra.mxu0 %v323
        %349 = vmatpush.msra.mxu0 %v322
        %350 = vmatmul.f32.gmra.mxu0 %v332
        %v351 = vpop.f32.mrf.mxu0
        %v352 = vadd.f32 %v328, %v351
        %353 = vdwg.mxu0
        %355 = vrot.lane.b32.xlu0 %v352, 120
        %v356 = vpop.permute.xlu0 %355
        %vm357 = vcmask 64512
        %v358 = vsel %vm357, %v352, 0
        %v360 = vsel %vm357, %v356, 0
        %362 = vmatpush.xpose.msra.mxu0 0.0
        %363 = vmatpush.xpose.msra.mxu0 0.0
        %364 = vmatpush.xpose.msra.mxu0 0.0
        %365 = vmatpush.xpose.msra.mxu0 0.0
        %366 = vmatpush.xpose.msra.mxu0 0.0
        %367 = vmatpush.xpose.msra.mxu0 0.0
        %368 = vmatpush.xpose.msra.mxu0 0.0
        %369 = vmatpush.xpose.msra.mxu0 0.0
        %370 = vmatpush.xpose.msra.mxu0 0.0
        %371 = vmatpush.xpose.msra.mxu0 0.0
        %372 = vmatpush.xpose.msra.mxu0 0.0
        %373 = vmatpush.xpose.msra.mxu0 0.0
        %374 = vmatpush.xpose.msra.mxu0 0.0
        %375 = vmatpush.xpose.msra.mxu0 0.0
        %376 = vmatpush.xpose.msra.mxu0 0.0
        %377 = vmatpush.xpose.msra.mxu0 %v360
        %378 = vmatmul.f32.gmra.mxu0 %v358
        %v379 = vpop.f32.mrf.mxu0
        %v380 = vadd.f32 0.0, %v379
        %381 = vdwg.mxu0
        %v382 = vsel %vm357, %v380, -inf
        %383 = vmax.xlane.f32.xlu0 %v382
        %v384 = vpop.xlane.xlu0 %383
        %v385 = vsub.f32 %v380, %v384
        %v386 = vmul.f32 %v385, 1.442695
        %v387 = vpow.pop %v386
        %v388 = vsel %vm357, %v387, 0.0
        %389 = vadd.xlane.f32.xlu0 %v388
        %v390 = vpop.xlane.xlu0 %389
        %v391 = vrcp.pop %v390
        %v392 = vmul.f32 %v390, %v391
        %v393 = vsub.f32 1.0, %v392
        %v394 = vmul.f32 %v391, %v393
        %v395 = vadd.f32 %v391, %v394
        %vm396 = vweird.f32 %v390
        %vm397 = vweird.f32 %v391
        %vm398 = vmor %vm396, %vm397
        %v399 = vsel %vm398, %v391, %v395
        %v400 = vand.u32 2147483647, %v390
        %vm401 = vcmp.eq.f32.partialorder %v400, 8.507059e+37
        %v402 = vand.u32 %v390, 2147483648
        %v403 = vor.u32 1.1754944e-38, %v402
        %v404 = vsel %vm401, %v403, %v399
        %v405 = vmul.f32 1.0, %v404
        %v406 = vmul.f32 %v387, %v405
        %407 = vrot.lane.b32.xlu0 %v352, 112
        %v408 = vpop.permute.xlu0 %407
        %v411 = vsel %vm357, %v406, 0
        %413 = vmatpush.msra.mxu0 0.0
        %414 = vmatpush.msra.mxu0 0.0
        %415 = vmatpush.msra.mxu0 0.0
        %416 = vmatpush.msra.mxu0 0.0
        %417 = vmatpush.msra.mxu0 0.0
        %418 = vmatpush.msra.mxu0 0.0
        %419 = vmatpush.msra.mxu0 0.0
        %420 = vmatpush.msra.mxu0 0.0
        %421 = vmatpush.msra.mxu0 0.0
        %422 = vmatpush.msra.mxu0 0.0
        %423 = vmatpush.msra.mxu0 0.0
        %424 = vmatpush.msra.mxu0 0.0
        %425 = vmatpush.msra.mxu0 0.0
        %426 = vmatpush.msra.mxu0 0.0
        %427 = vmatpush.msra.mxu0 0.0
        %428 = vmatpush.msra.mxu0 %v408
        %429 = vmatmul.f32.gmra.mxu0 %v411
        %v430 = vpop.f32.mrf.mxu0
        %v431 = vadd.f32 0.0, %v430
        %432 = vdwg.mxu0
        %v433 = vld [vmem:[%s320] sm:$0xff]
        %v435 = vsel %vm357, %v431, 0
        %437 = vmatpush.msra.mxu0 0.0
        %438 = vmatpush.msra.mxu0 0.0
        %439 = vmatpush.msra.mxu0 0.0
        %440 = vmatpush.msra.mxu0 0.0
        %441 = vmatpush.msra.mxu0 0.0
        %442 = vmatpush.msra.mxu0 0.0
        %443 = vmatpush.msra.mxu0 0.0
        %444 = vmatpush.msra.mxu0 0.0
        %445 = vmatpush.msra.mxu0 0.0
        %446 = vmatpush.msra.mxu0 0.0
        %447 = vmatpush.msra.mxu0 0.0
        %448 = vmatpush.msra.mxu0 0.0
        %449 = vmatpush.msra.mxu0 0.0
        %450 = vmatpush.msra.mxu0 0.0
        %451 = vmatpush.msra.mxu0 0.0
        %452 = vmatpush.msra.mxu0 %v433
        %453 = vmatmul.f32.gmra.mxu0 %v435
        %v454 = vpop.f32.mrf.mxu0
        %v455 = vadd.f32 0.0, %v454
        %456 = vdwg.mxu0
        %p457 = scmp.eq.s32.totalorder %s29, 0
        // Predicated region
        $region41: #{tpu_custom_call.1} parent=39 // pred_check
          %p458 = pneg %p457
        $region42: #{tpu_custom_call.1} parent=39 // pred_check_branch
          %460 = sbr.rel (%p458) target = $region44
        $region43: #{tpu_custom_call.1} parent=39 // pred_region
          %v461 = vld [vmem:[%s4] sm:$0x1]
          %v463 = vperm.slane %v461, 0
          %465 = vst.msk [vmem:[%s297] sm:$0xff] %vm330, %v463
          %466 = vst.msk [vmem:[%s304] sm:$0xff] %vm357, 0.0
        $region44: #{tpu_custom_call.1} parent=39 // pred_fallthru
          _
        %v467 = vld [vmem:[%s297] sm:$0xff]
        %v468 = vadd.f32 %v467, %v455
        %469 = vst.msk [vmem:[%s297] sm:$0xff] %vm330, %v468
        %v470 = vld [vmem:[%s304] sm:$0xff]
        %v471 = vadd.f32 %v470, %v406
        %472 = vst.msk [vmem:[%s304] sm:$0xff] %vm357, %v471
        %p473 = scmp.eq.s32.totalorder %s29, 3
        // Predicated region
        $region45: #{tpu_custom_call.1} parent=39 // pred_check
          %p474 = pneg %p473
        $region46: #{tpu_custom_call.1} parent=39 // pred_check_branch
          %476 = sbr.rel (%p474) target = $region48
        $region47: #{tpu_custom_call.1} parent=39 // pred_region
          %v477 = vld [vmem:[%s304] sm:$0xff]
          %v478 = vmul.f32 %v477, 0.25
          %479 = vst.msk [vmem:[%s304] sm:$0xff] %vm357, %v478
        $region48: #{tpu_custom_call.1} parent=39 // pred_fallthru
          _
        %s480 = sand.u32 %s169, 1
        %s481 = scalar_lea.sflag [#allocation3], %s480
        %s482 = sand.u32 %s169, 1
        %s483 = smul.addr %s482, 8
        %s484 = scalar_lea.vmem [#allocation2], %s483
        %s485 = sand.u32 %s195, 1
        %s486 = scalar_lea.sflag [#allocation5], %s485
        %s487 = sand.u32 %s195, 1
        %s488 = smul.addr %s487, 8
        %s489 = scalar_lea.vmem [#allocation4], %s488
        // Predicated region
        $region49: #{tpu_custom_call.1} parent=39 // pred_check
          %p490 = pneg %p179
        $region50: #{tpu_custom_call.1} parent=39 // pred_check_branch
          %492 = sbr.rel (%p490) target = $region52
        $region51: #{tpu_custom_call.1} parent=39 // pred_region
          %494 = vsyncadd %s481, 0
          %s495 = smul.addr %s28, 8
          %s496 = scalar_lea.hbm %s5, %s495
          %s498 = sshll.u32 %s484, 4
          %s499 = int_to_ptr.vmem [resolvable:$true] %s498
          %s500 = sshll.u32 %s496, 4
          %s501 = int_to_ptr.hbm [resolvable:$true] %s500
          %503 = dma.vmem_to_hbm [thread:$0]  %s499, 128, %s501, %s481
        $region52: #{tpu_custom_call.1} parent=39 // pred_fallthru
          _
        // Predicated region
        $region53: #{tpu_custom_call.1} parent=39 // pred_check
          %p504 = pneg %p205
        $region54: #{tpu_custom_call.1} parent=39 // pred_check_branch
          %506 = sbr.rel (%p504) target = $region56
        $region55: #{tpu_custom_call.1} parent=39 // pred_region
          %508 = vsyncadd %s486, 0
          %s509 = smul.addr %s28, 8
          %s510 = scalar_lea.hbm %s6, %s509
          %s512 = sshll.u32 %s489, 4
          %s513 = int_to_ptr.vmem [resolvable:$true] %s512
          %s514 = sshll.u32 %s510, 4
          %s515 = int_to_ptr.hbm [resolvable:$true] %s514
          %517 = dma.vmem_to_hbm [thread:$0]  %s513, 128, %s515, %s486
        $region56: #{tpu_custom_call.1} parent=39 // pred_fallthru
          _
      $region40: #{tpu_custom_call.1} parent=5 // pred_fallthru
        _
      %p518 = scmp.le.s32.totalorder 2, %s19
      // Predicated region
      $region57: #{tpu_custom_call.1} parent=5 // pred_check
        %p519 = pneg %p518
      $region58: #{tpu_custom_call.1} parent=5 // pred_check_branch
        %521 = sbr.rel (%p519) target = $region60
      $region59: #{tpu_custom_call.1} parent=5 // pred_region
        %s522 = ssub.s32 %s19, 2
        // Predicated region
        $region61: #{tpu_custom_call.1} parent=59 // pred_check
          %p523 = pneg %p185
        $region62: #{tpu_custom_call.1} parent=59 // pred_check_branch
          %525 = sbr.rel (%p523) target = $region64
        $region63: #{tpu_custom_call.1} parent=59 // pred_region
          %s526 = sand.u32 %s170, 1
          %s527 = scalar_lea.sflag [#allocation3], %s526
          %s528 = sand.u32 %s170, 1
          %s529 = smul.addr %s528, 8
          %s530 = scalar_lea.vmem [#allocation2], %s529
          %532 = dma.done %s527, 128
        $region64: #{tpu_custom_call.1} parent=59 // pred_fallthru
          _
        // Predicated region
        $region65: #{tpu_custom_call.1} parent=59 // pred_check
          %p533 = pneg %p211
        $region66: #{tpu_custom_call.1} parent=59 // pred_check_branch
          %535 = sbr.rel (%p533) target = $region68
        $region67: #{tpu_custom_call.1} parent=59 // pred_region
          %s536 = sand.u32 %s196, 1
          %s537 = scalar_lea.sflag [#allocation5], %s536
          %s538 = sand.u32 %s196, 1
          %s539 = smul.addr %s538, 8
          %s540 = scalar_lea.vmem [#allocation4], %s539
          %542 = dma.done %s537, 128
        $region68: #{tpu_custom_call.1} parent=59 // pred_fallthru
          _
      $region60: #{tpu_custom_call.1} parent=5 // pred_fallthru
        _
    $region6: #{tpu_custom_call.1} parent=1 // loop_footer
      %s23 = sadd.s32 1, %s19
    $region7: #{tpu_custom_call.1} parent=1 // loop_footer_branch
      %18 = sbr.rel target = $region3
    $region8: #{tpu_custom_call.1} parent=1 // loop_exit
      _
    %543 = vsyncpa [#allocation3], 1
    %s544 = scalar_lea.sflag [#allocation3], 1
    %545 = vsyncpa %s544, 1
    %546 = vsyncpa [#allocation5], 1
    %s547 = scalar_lea.sflag [#allocation5], 1
    %548 = vsyncpa %s547, 1

</llo_original>
